<compile_context>
chip_gen: v5e
topology: v5e:2x2
jax: 0.10.0
libtpu: 0.0.40
codegen_flags: <defaults>
</compile_context>

<pallas_src>
import jax
import jax.numpy as jnp
from jax.experimental import pallas as pl
from jax.experimental.pallas import tpu as pltpu


# ----------------------------------------------------------------------------
# Faithful translation of Adversial_loss.forward (it is an empty forward).
# ----------------------------------------------------------------------------
class AdversialLoss:
    def __init__(self):
        # nn.Module.__init__ only; no parameters.
        pass

    def forward(self):
        # PyTorch forward body is `pass` -> returns None.
        return None

    __call__ = forward


# ----------------------------------------------------------------------------
# Pallas kernel: f-GAN KL adversarial loss, tiled + masked row/col reduction.
# ----------------------------------------------------------------------------
def _cdiv(a: int, b: int) -> int:
    return -(-a // b)


def _round_up(x: int, m: int) -> int:
    return _cdiv(x, m) * m


_NUM_PARTS = 2  # leading "parallel" grid axis (both TCs on v7x; harmless on 1-TC)


def kl_adversarial_loss(d_real: jax.Array, d_fake: jax.Array, *,
                        tile_b=None, tile_n=None):
    """f-GAN KL adversarial loss via a tiled Pallas TPU reduction.

    d_real, d_fake: (B, N) float32 or bfloat16 discriminator outputs.
    Returns a scalar float32:  -(mean(d_real) - mean(exp(d_fake - 1))).
    """
    assert d_real.shape == d_fake.shape and d_real.ndim == 2
    assert d_real.dtype == d_fake.dtype
    B, N = d_real.shape
    itemsize = jnp.dtype(d_real.dtype).itemsize
    # sublane alignment unit: 8 rows for 32-bit, 16 for bf16.
    sub = 8 * max(1, 4 // itemsize)

    # ---- chip-aware VMEM budgets -------------------------------------------
    try:
        vmem_cap = int(getattr(pltpu.get_tpu_info(), "vmem_capacity_bytes", 0))
    except Exception:  # pragma: no cover - conservative fallback
        vmem_cap = 0
    if vmem_cap >= 100 * 2**20:          # v5e / v6e: 128 MiB physical VMEM
        input_budget = 48 * 2**20        # 2 inputs x 2 pipeline buffers x tile
        vmem_limit = 96 * 2**20
    else:                                # v7x (64 MiB) or unknown: stay safe
        input_budget = 28 * 2**20
        vmem_limit = 44 * 2**20

    # ---- tiling -------------------------------------------------------------
    N128 = _round_up(N, 128)
    if tile_n is None:
        tile_n = min(N128, 4096)         # cap lane tile so VMEM stays bounded
    tile_n = max(128, (int(tile_n) // 128) * 128)
    tile_n = min(tile_n, N128)

    rows_per_part = _cdiv(B, _NUM_PARTS)
    if tile_b is None:
        tile_b = input_budget // (4 * tile_n * itemsize)
    tile_b = max(sub, (int(tile_b) // sub) * sub)
    tile_b = min(tile_b, _round_up(rows_per_part, sub))

    nb_total = max(1, _cdiv(B, tile_b))          # total row blocks
    nb_per_part = _cdiv(nb_total, _NUM_PARTS)    # row blocks each part owns
    nn_tiles = max(1, _cdiv(N, tile_n))          # lane blocks (reduction, last)

    inv_n = 1.0 / float(B * N)

    def in_map(p, i, j):
        # Clamp fully-out-of-range row blocks (last part may overshoot); the
        # in-kernel mask (built from the UNCLAMPED logical index) zeroes them.
        bi = jnp.minimum(p * nb_per_part + i, nb_total - 1)
        return (bi, j)

    def kernel(dr_ref, df_ref, out_ref, acc_ref):
        p = pl.program_id(0)
        i = pl.program_id(1)
        j = pl.program_id(2)

        @pl.when(jnp.logical_and(i == 0, j == 0))
        def _init():
            acc_ref[...] = jnp.zeros_like(acc_ref)

        dr_t = dr_ref[...].astype(jnp.float32)
        df_t = df_ref[...].astype(jnp.float32)

        # Logical (unclamped) element offsets of this tile; OOB rows/cols masked.
        row0 = (p * nb_per_part + i) * tile_b
        col0 = j * tile_n
        rows = row0 + jax.lax.broadcasted_iota(jnp.int32, (tile_b, tile_n), 0)
        cols = col0 + jax.lax.broadcasted_iota(jnp.int32, (tile_b, tile_n), 1)
        mask = jnp.logical_and(rows < B, cols < N)

        # Loss integrand: exp(x_fake - 1) - x_real.  The "-1" stays inside exp
        # (no exp(x)*e^-1 overflow edge case).  Mask selected AFTER the exp so
        # garbage tail data (inf/NaN) is dropped, never multiplied.
        val = jnp.exp(df_t - 1.0) - dr_t
        contrib = jnp.where(mask, val, 0.0)

        # VPU-only per-tile accumulation into an (8, tile_n) vector accumulator;
        # the costly cross-lane reduce happens once per part at finalize.
        acc_ref[...] += contrib.reshape(tile_b // 8, 8, tile_n).sum(axis=0)

        @pl.when(jnp.logical_and(i == pl.num_programs(1) - 1,
                                 j == pl.num_programs(2) - 1))
        def _finalize():
            # Lane/sublane-dense (8, 128) partial per part -> unmasked vst.
            part = acc_ref[...].reshape(8, tile_n // 128, 128).sum(axis=1)
            out_ref[...] = part[None, :, :]

    partials = pl.pallas_call(
        kernel,
        out_shape=jax.ShapeDtypeStruct((_NUM_PARTS, 8, 128), jnp.float32),
        grid_spec=pltpu.PrefetchScalarGridSpec(
            num_scalar_prefetch=0,
            grid=(_NUM_PARTS, nb_per_part, nn_tiles),
            in_specs=[
                pl.BlockSpec((tile_b, tile_n), in_map),
                pl.BlockSpec((tile_b, tile_n), in_map),
            ],
            out_specs=pl.BlockSpec((1, 8, 128), lambda p, i, j: (p, 0, 0)),
            scratch_shapes=[pltpu.VMEM((8, tile_n), jnp.float32)],
        ),
        compiler_params=pltpu.CompilerParams(
            dimension_semantics=("parallel", "arbitrary", "arbitrary"),
            vmem_limit_bytes=vmem_limit,
        ),
        cost_estimate=pl.CostEstimate(
            flops=3 * B * N,
            transcendentals=B * N,
            bytes_accessed=2 * B * N * itemsize + _NUM_PARTS * 8 * 128 * 4,
        ),
    )(d_real, d_fake)

    # loss = mean(exp(d_fake - 1)) - mean(d_real) = -(E_real[T] - E_fake[exp(T-1)])
    return jnp.sum(partials) * inv_n


if __name__ == "__main__":
    # Faithful module call: empty forward, returns None.
    module = AdversialLoss()
    assert module() is None  # matches PyTorch `pass` forward exactly

    key = jax.random.PRNGKey(0)
    ks = jax.random.split(key, 8)

    def ref_loss(dr, df):
        dr = dr.astype(jnp.float32)
        df = df.astype(jnp.float32)
        return -(jnp.mean(dr) - jnp.mean(jnp.exp(df - 1.0)))

    # 1) aligned small f32 shape (single row block per part).
    dr1 = jax.random.normal(ks[0], (8, 128), jnp.float32)
    df1 = jax.random.normal(ks[1], (8, 128), jnp.float32)
    l1 = kl_adversarial_loss(dr1, df1)
    jax.block_until_ready(l1)
    assert jnp.allclose(l1, ref_loss(dr1, df1), atol=1e-5, rtol=1e-5), (
        l1, ref_loss(dr1, df1))

    # 2) unaligned (30, 200): exercises in-kernel tail masking (no jnp.pad).
    dr2 = jax.random.normal(ks[2], (30, 200), jnp.float32)
    df2 = jax.random.normal(ks[3], (30, 200), jnp.float32)
    l2 = kl_adversarial_loss(dr2, df2)
    jax.block_until_ready(l2)
    assert jnp.allclose(l2, ref_loss(dr2, df2), atol=1e-5, rtol=1e-5), (
        l2, ref_loss(dr2, df2))

    # 3) forced small tiles: multi-step accumulation over both row and lane axes.
    dr3 = jax.random.normal(ks[4], (64, 384), jnp.float32)
    df3 = jax.random.normal(ks[5], (64, 384), jnp.float32)
    l3 = kl_adversarial_loss(dr3, df3, tile_b=8, tile_n=128)
    jax.block_until_ready(l3)
    assert jnp.allclose(l3, ref_loss(dr3, df3), atol=1e-5, rtol=1e-5), (
        l3, ref_loss(dr3, df3))

    # 4) bf16 inputs (half the HBM bytes) with f32 accumulation in-kernel.
    dr4 = jax.random.normal(ks[6], (32, 256), jnp.float32).astype(jnp.bfloat16)
    df4 = jax.random.normal(ks[7], (32, 256), jnp.float32).astype(jnp.bfloat16)
    l4 = kl_adversarial_loss(dr4, df4)
    jax.block_until_ready(l4)
    assert jnp.allclose(l4, ref_loss(dr4, df4), atol=1e-4, rtol=1e-4), (
        l4, ref_loss(dr4, df4))

    print("KERNEL_OK")
</pallas_src>

<mosaic_0001>
module attributes {stable_mosaic.version = 11 : i64} {
  func.func @kernel(%arg0: i32, %arg1: i32, %arg2: i32, %arg3: memref<8x128xf32, #tpu.memory_space<vmem>>, %arg4: memref<8x128xf32, #tpu.memory_space<vmem>>, %arg5: memref<1x8x128xf32, #tpu.memory_space<vmem>>, %arg6: memref<8x128xf32, #tpu.memory_space<vmem>>) attributes {dimension_semantics = [#tpu.dimension_semantics<parallel>, #tpu.dimension_semantics<arbitrary>, #tpu.dimension_semantics<arbitrary>], iteration_bounds = array<i64: 2, 1, 1>, scalar_prefetch = 0 : i64, scratch_operands = 1 : i64, tpu.core_type = #tpu.core_type<tc>, window_params = [{transform_indices = @transform_0, window_bounds = array<i64: 8, 128>}, {transform_indices = @transform_1, window_bounds = array<i64: 8, 128>}, {transform_indices = @transform_2, window_bounds = array<i64: 1, 8, 128>}]} {
    %c0_i32 = arith.constant 0 : i32
    %0 = arith.cmpi eq, %arg1, %c0_i32 : i32
    %c0_i32_0 = arith.constant 0 : i32
    %1 = arith.cmpi eq, %arg2, %c0_i32_0 : i32
    %2 = arith.andi %0, %1 : i1
    %3 = arith.extui %2 : i1 to i32
    %c0_i32_1 = arith.constant 0 : i32
    %4 = arith.cmpi ne, %3, %c0_i32_1 : i32
    scf.if %4 {
      %cst_16 = arith.constant 0.000000e+00 : f32
      %38 = vector.broadcast %cst_16 : f32 to vector<8x128xf32>
      %c0_17 = arith.constant 0 : index
      %c0_18 = arith.constant 0 : index
      %39 = vector.load %arg6[%c0_17, %c0_18] : memref<8x128xf32, #tpu.memory_space<vmem>>, vector<8x128xf32>
      tpu.vector_store %arg6[%c0_17, %c0_18], %38 {strides = array<i32>} : memref<8x128xf32, #tpu.memory_space<vmem>>, vector<8x128xf32>,
    } else {
    }
    %c0 = arith.constant 0 : index
    %c0_2 = arith.constant 0 : index
    %5 = vector.load %arg3[%c0, %c0_2] : memref<8x128xf32, #tpu.memory_space<vmem>>, vector<8x128xf32>
    %c0_3 = arith.constant 0 : index
    %c0_4 = arith.constant 0 : index
    %6 = vector.load %arg4[%c0_3, %c0_4] : memref<8x128xf32, #tpu.memory_space<vmem>>, vector<8x128xf32>
    %c1_i32 = arith.constant 1 : i32
    %7 = arith.muli %arg0, %c1_i32 : i32
    %8 = arith.addi %7, %arg1 : i32
    %c8_i32 = arith.constant 8 : i32
    %9 = arith.muli %8, %c8_i32 : i32
    %c128_i32 = arith.constant 128 : i32
    %10 = arith.muli %arg2, %c128_i32 : i32
    %11 = tpu.iota {dimensions = array<i32: 0>} : vector<8x128xi32>
    %12 = vector.broadcast %9 : i32 to vector<8x128xi32>
    %13 = arith.addi %12, %11 : vector<8x128xi32>
    %14 = tpu.iota {dimensions = array<i32: 1>} : vector<8x128xi32>
    %15 = vector.broadcast %10 : i32 to vector<8x128xi32>
    %16 = arith.addi %15, %14 : vector<8x128xi32>
    %c8_i32_5 = arith.constant 8 : i32
    %17 = vector.broadcast %c8_i32_5 : i32 to vector<8x128xi32>
    %18 = arith.cmpi slt, %13, %17 : vector<8x128xi32>
    %c128_i32_6 = arith.constant 128 : i32
    %19 = vector.broadcast %c128_i32_6 : i32 to vector<8x128xi32>
    %20 = arith.cmpi slt, %16, %19 : vector<8x128xi32>
    %21 = arith.andi %18, %20 : vector<8x128xi1>
    %cst = arith.constant 1.000000e+00 : f32
    %22 = vector.broadcast %cst : f32 to vector<8x128xf32>
    %23 = arith.subf %6, %22 : vector<8x128xf32>
    %24 = math.exp %23 : vector<8x128xf32>
    %25 = arith.subf %24, %5 : vector<8x128xf32>
    %cst_7 = arith.constant 0.000000e+00 : f32
    %26 = vector.broadcast %cst_7 : f32 to vector<8x128xf32>
    %27 = arith.select %21, %25, %26 : vector<8x128xi1>, vector<8x128xf32>
    %c0_8 = arith.constant 0 : index
    %c0_9 = arith.constant 0 : index
    %28 = vector.load %arg6[%c0_8, %c0_9] : memref<8x128xf32, #tpu.memory_space<vmem>>, vector<8x128xf32>
    %29 = vector.shape_cast %27 : vector<8x128xf32> to vector<1x8x128xf32>
    %cst_10 = arith.constant dense<0.000000e+00> : vector<8x128xf32>
    %30 = vector.multi_reduction <add>, %29, %cst_10 [0] : vector<1x8x128xf32> to vector<8x128xf32>
    %31 = arith.addf %28, %30 : vector<8x128xf32>
    %c0_11 = arith.constant 0 : index
    %c0_12 = arith.constant 0 : index
    %32 = vector.load %arg6[%c0_11, %c0_12] : memref<8x128xf32, #tpu.memory_space<vmem>>, vector<8x128xf32>
    tpu.vector_store %arg6[%c0_11, %c0_12], %31 {strides = array<i32>} : memref<8x128xf32, #tpu.memory_space<vmem>>, vector<8x128xf32>,
    %c0_i32_13 = arith.constant 0 : i32
    %33 = arith.cmpi eq, %arg1, %c0_i32_13 : i32
    %c0_i32_14 = arith.constant 0 : i32
    %34 = arith.cmpi eq, %arg2, %c0_i32_14 : i32
    %35 = arith.andi %33, %34 : i1
    %36 = arith.extui %35 : i1 to i32
    %c0_i32_15 = arith.constant 0 : i32
    %37 = arith.cmpi ne, %36, %c0_i32_15 : i32
    scf.if %37 {
      %c0_16 = arith.constant 0 : index
      %c0_17 = arith.constant 0 : index
      %38 = vector.load %arg6[%c0_16, %c0_17] : memref<8x128xf32, #tpu.memory_space<vmem>>, vector<8x128xf32>
      %39 = vector.shape_cast %38 : vector<8x128xf32> to vector<8x1x128xf32>
      %cst_18 = arith.constant dense<0.000000e+00> : vector<8x128xf32>
      %40 = vector.multi_reduction <add>, %39, %cst_18 [1] : vector<8x1x128xf32> to vector<8x128xf32>
      %41 = vector.shape_cast %40 : vector<8x128xf32> to vector<1x8x128xf32>
      %c0_19 = arith.constant 0 : index
      %c0_20 = arith.constant 0 : index
      %c0_21 = arith.constant 0 : index
      %42 = vector.load %arg5[%c0_19, %c0_20, %c0_21] : memref<1x8x128xf32, #tpu.memory_space<vmem>>, vector<1x8x128xf32>
      tpu.vector_store %arg5[%c0_19, %c0_20, %c0_21], %41 {strides = array<i32>} : memref<1x8x128xf32, #tpu.memory_space<vmem>>, vector<1x8x128xf32>,
    } else {
    }
    return
  }
  func.func @transform_0(%arg0: i32, %arg1: i32, %arg2: i32) -> (i32, i32) {
    %c1_i32 = arith.constant 1 : i32
    %0 = arith.muli %arg0, %c1_i32 : i32
    %1 = arith.addi %0, %arg1 : i32
    %c0_i32 = arith.constant 0 : i32
    %2 = arith.minsi %1, %c0_i32 : i32
    %c0_i32_0 = arith.constant 0 : i32
    return %2, %arg2 : i32, i32
  }
  func.func @transform_1(%arg0: i32, %arg1: i32, %arg2: i32) -> (i32, i32) {
    %c1_i32 = arith.constant 1 : i32
    %0 = arith.muli %arg0, %c1_i32 : i32
    %1 = arith.addi %0, %arg1 : i32
    %c0_i32 = arith.constant 0 : i32
    %2 = arith.minsi %1, %c0_i32 : i32
    %c0_i32_0 = arith.constant 0 : i32
    return %2, %arg2 : i32, i32
  }
  func.func @transform_2(%arg0: i32, %arg1: i32, %arg2: i32) -> (i32, i32, i32) {
    %c0_i32 = arith.constant 0 : i32
    %c0_i32_0 = arith.constant 0 : i32
    %c0_i32_1 = arith.constant 0 : i32
    return %arg0, %c0_i32, %c0_i32_0 : i32, i32, i32
  }
}

</mosaic_0001>

<llo_original>
// kernel: tpu_custom_call.1
$region0: #{tpu_custom_call.1}
  #allocation0 [shape = 'u32[]', space=smem, size = 0x4, offset = 0x4, fixed_abs, tag = 'smem constant byte address 0x4 - core index']
  #allocation1 [shape = 'u32[72,128]{1,0:T(1,128)}', space=vmem, size = 0x9000, scoped, tag = 'internal scratch']
  #allocation2 [shape = 'f32[8,128]{1,0:T(8,128)}', space=vmem, size = 0x1000, scoped, tag = 'scratch operand']
  %s0 = inlined_call_operand.hbm [shape: f32[8,128], index: 0, kind: input, shape index: {}]
  %s1 = inlined_call_operand.hbm [shape: f32[8,128], index: 1, kind: input, shape index: {}]
  %s2 = inlined_call_operand.hbm [shape: f32[2,8,128], index: 2, kind: output, shape index: {}]
  %s3 = sld [smem:[#allocation0]]
  $region57: #{tpu_custom_call.1} parent=0
    _
  %s5 = ssub.s32 1, %s3
  %s6 = scalar_select 0, %s5, %s3
  $region1: #{tpu_custom_call.1} parent=0
    #allocation3 [shape = 'u8[8192]{0}', space=vmem, size = 0x2000, scoped, tag = 'input window, operand 0']
    #allocation4 [shape = 's32[2]{0}', space=sflag, size = 0x8, scoped, tag = 'scoped memory for tpu_custom_call.1']
    #allocation5 [shape = 's32[2]{0}', space=sflag, size = 0x8, scoped, tag = 'scoped memory for tpu_custom_call.1']
    #allocation6 [shape = 'u8[8192]{0}', space=vmem, size = 0x2000, scoped, tag = 'input window, operand 1']
    #allocation7 [shape = 's32[2]{0}', space=sflag, size = 0x8, scoped, tag = 'scoped memory for tpu_custom_call.1']
    #allocation8 [shape = 'u8[8192]{0}', space=vmem, size = 0x2000, scoped, tag = 'output window, operand 0']
    %7 = vsyncpa [#allocation4], 0
    %s8 = scalar_lea.sflag [#allocation4], 1
    %9 = vsyncpa %s8, 0
    %10 = vsyncpa [#allocation7], 0
    %s11 = scalar_lea.sflag [#allocation7], 1
    %12 = vsyncpa %s11, 0
    %13 = vsyncpa [#allocation5], 0
    %s14 = scalar_lea.sflag [#allocation5], 1
    %15 = vsyncpa %s14, 0
    loop: start=0, step=1, limit=4
    $region2: #{tpu_custom_call.1} parent=1 // loop_pre_header
      _
    $region3: #{tpu_custom_call.1} parent=1 // loop_header
      %s17 = sphi 0, %s21
      %p18 = scmp.ge.s32.totalorder %s17, 4
      %s24 = sphi 0, %s43
      %s25 = sphi 0, %s39
      %s26 = sphi 0, %s35
      %s27 = sphi 0, %s24
      %s28 = sphi 0, %s25
      %s29 = sphi 0, %s26
      %s30 = sphi 0, %s27
      %s31 = sphi 0, %s28
      %s32 = sphi 0, %s29
      %s54 = sphi 0, %s56
      %s57 = sphi 0, %s54
      %s58 = sphi 0, %s57
      %s74 = sphi 0, %s58
      %s88 = sphi 0, %s90
      %s91 = sphi 0, %s88
      %s92 = sphi 0, %s91
      %s108 = sphi 0, %s92
      %s114 = sphi 0, %s116
      %s117 = sphi 0, %s114
      %s118 = sphi 0, %s117
      %s134 = sphi 0, %s118
    $region4: #{tpu_custom_call.1} parent=1 // loop_header_branch
      %20 = sbr.rel (%p18) target = $region8
    $region5: #{tpu_custom_call.1} parent=1 // loop_body
      %s22 = ssub.s32 %s17, 1
      %s23 = ssub.s32 %s17, 2
      %s33 = sadd.s32 1, %s26
      %p34 = scmp.ge.s32.totalorder %s33, 1
      %s35 = scalar_select %p34, 0, %s33
      %s36 = sadd.s32 1, %s25
      %s37 = scalar_select %p34, %s36, %s25
      %p38 = scmp.ge.s32.totalorder %s37, 1
      %s39 = scalar_select %p38, 0, %s37
      %s40 = sadd.s32 1, %s24
      %s41 = scalar_select %p38, %s40, %s24
      %p42 = scmp.ge.s32.totalorder %s41, 2
      %s43 = scalar_select %p42, 0, %s41
      %s44 = sadd.s32 %s24, %s25
      %p45 = scmp.lt.s32.totalorder %s44, 0
      %s46 = scalar_select %p45, %s44, 0
      %s47 = sadd.s32 %s43, %s39
      %p48 = scmp.lt.s32.totalorder %s47, 0
      %s49 = scalar_select %p48, %s47, 0
      %s50 = ssub.s32 %s46, %s49
      %s51 = ssub.s32 %s26, %s35
      %s52 = sor.u32 %s50, %s51
      %p53 = scmp.eq.s32.totalorder %s52, 0
      %s55 = sadd.s32 %s54, 1
      %s56 = scalar_select %p53, %s54, %s55
      %p59 = pneg %p53
      %p60 = scmp.eq.s32.totalorder %s17, 1
      %p61 = por %p59, %p60
      %p62 = scmp.ne.s32.totalorder %s54, %s57
      %p63 = scmp.eq.s32.totalorder %s17, 0
      %p64 = por %p62, %p63
      %p65 = scmp.ne.s32.totalorder %s54, %s57
      %p66 = scmp.eq.s32.totalorder %s22, 1
      %p67 = por %p65, %p66
      %p68 = scmp.ne.s32.totalorder %s57, %s58
      %p69 = scmp.eq.s32.totalorder %s22, 0
      %p70 = por %p68, %p69
      %p71 = scmp.ne.s32.totalorder %s57, %s58
      %p72 = scmp.eq.s32.totalorder %s23, 1
      %p73 = por %p71, %p72
      %p75 = scmp.ne.s32.totalorder %s58, %s74
      %p76 = scmp.eq.s32.totalorder %s23, 0
      %p77 = por %p75, %p76
      %s78 = sadd.s32 %s24, %s25
      %p79 = scmp.lt.s32.totalorder %s78, 0
      %s80 = scalar_select %p79, %s78, 0
      %s81 = sadd.s32 %s43, %s39
      %p82 = scmp.lt.s32.totalorder %s81, 0
      %s83 = scalar_select %p82, %s81, 0
      %s84 = ssub.s32 %s80, %s83
      %s85 = ssub.s32 %s26, %s35
      %s86 = sor.u32 %s84, %s85
      %p87 = scmp.eq.s32.totalorder %s86, 0
      %s89 = sadd.s32 %s88, 1
      %s90 = scalar_select %p87, %s88, %s89
      %p93 = pneg %p87
      %p94 = scmp.eq.s32.totalorder %s17, 1
      %p95 = por %p93, %p94
      %p96 = scmp.ne.s32.totalorder %s88, %s91
      %p97 = scmp.eq.s32.totalorder %s17, 0
      %p98 = por %p96, %p97
      %p99 = scmp.ne.s32.totalorder %s88, %s91
      %p100 = scmp.eq.s32.totalorder %s22, 1
      %p101 = por %p99, %p100
      %p102 = scmp.ne.s32.totalorder %s91, %s92
      %p103 = scmp.eq.s32.totalorder %s22, 0
      %p104 = por %p102, %p103
      %p105 = scmp.ne.s32.totalorder %s91, %s92
      %p106 = scmp.eq.s32.totalorder %s23, 1
      %p107 = por %p105, %p106
      %p109 = scmp.ne.s32.totalorder %s92, %s108
      %p110 = scmp.eq.s32.totalorder %s23, 0
      %p111 = por %p109, %p110
      %s112 = ssub.s32 %s24, %s43
      %p113 = scmp.eq.s32.totalorder %s112, 0
      %s115 = sadd.s32 %s114, 1
      %s116 = scalar_select %p113, %s114, %s115
      %p119 = pneg %p113
      %p120 = scmp.eq.s32.totalorder %s17, 1
      %p121 = por %p119, %p120
      %p122 = scmp.ne.s32.totalorder %s114, %s117
      %p123 = scmp.eq.s32.totalorder %s17, 0
      %p124 = por %p122, %p123
      %p125 = scmp.ne.s32.totalorder %s114, %s117
      %p126 = scmp.eq.s32.totalorder %s22, 1
      %p127 = por %p125, %p126
      %p128 = scmp.ne.s32.totalorder %s117, %s118
      %p129 = scmp.eq.s32.totalorder %s22, 0
      %p130 = por %p128, %p129
      %p131 = scmp.ne.s32.totalorder %s117, %s118
      %p132 = scmp.eq.s32.totalorder %s23, 1
      %p133 = por %p131, %p132
      %p135 = scmp.ne.s32.totalorder %s118, %s134
      %p136 = scmp.eq.s32.totalorder %s23, 0
      %p137 = por %p135, %p136
      %p138 = scmp.le.s32.totalorder 1, %s17
      %p139 = scmp.lt.s32.totalorder %s17, 3
      %p140 = pnand %p138, %p139
      %p141 = pneg %p140
      // Predicated region
      $region9: #{tpu_custom_call.1} parent=5 // pred_check
        _
      $region10: #{tpu_custom_call.1} parent=5 // pred_check_branch
        %143 = sbr.rel (%p140) target = $region12
      $region11: #{tpu_custom_call.1} parent=5 // pred_region
        %s144 = ssub.s32 %s17, 1
      $region12: #{tpu_custom_call.1} parent=5 // pred_fallthru
        _
      %p145 = scmp.lt.s32.totalorder %s17, 2
      // Predicated region
      $region13: #{tpu_custom_call.1} parent=5 // pred_check
        %p146 = pneg %p145
      $region14: #{tpu_custom_call.1} parent=5 // pred_check_branch
        %148 = sbr.rel (%p146) target = $region16
      $region15: #{tpu_custom_call.1} parent=5 // pred_region
        // Predicated region
        $region17: #{tpu_custom_call.1} parent=15 // pred_check
          %p149 = pneg %p64
        $region18: #{tpu_custom_call.1} parent=15 // pred_check_branch
          %151 = sbr.rel (%p149) target = $region20
        $region19: #{tpu_custom_call.1} parent=15 // pred_region
          %s152 = sand.u32 %s54, 1
          %s153 = scalar_lea.sflag [#allocation4], %s152
          %s154 = sand.u32 %s54, 1
          %s155 = smul.addr %s154, 8
          %s156 = scalar_lea.vmem [#allocation3], %s155
          %s157 = sadd.s32 %s24, %s25
          %p158 = scmp.lt.s32.totalorder %s157, 0
          %s159 = scalar_select %p158, %s157, 0
          %161 = vsyncadd %s153, 0
          %s162 = sadd.s32 %s26, %s159
          %s163 = smul.addr %s162, 8
          %s164 = scalar_lea.hbm %s0, %s163
          %s166 = sshll.u32 %s164, 4
          %s167 = int_to_ptr.hbm [resolvable:$true] %s166
          %s168 = sshll.u32 %s156, 4
          %s169 = int_to_ptr.vmem [resolvable:$true] %s168
          %171 = dma.hbm_to_vmem [thread:$0]  %s167, 128, %s169, %s153
        $region20: #{tpu_custom_call.1} parent=15 // pred_fallthru
          _
        // Predicated region
        $region21: #{tpu_custom_call.1} parent=15 // pred_check
          %p172 = pneg %p98
        $region22: #{tpu_custom_call.1} parent=15 // pred_check_branch
          %174 = sbr.rel (%p172) target = $region24
        $region23: #{tpu_custom_call.1} parent=15 // pred_region
          %s175 = sand.u32 %s88, 1
          %s176 = scalar_lea.sflag [#allocation7], %s175
          %s177 = sand.u32 %s88, 1
          %s178 = smul.addr %s177, 8
          %s179 = scalar_lea.vmem [#allocation6], %s178
          %s180 = sadd.s32 %s24, %s25
          %p181 = scmp.lt.s32.totalorder %s180, 0
          %s182 = scalar_select %p181, %s180, 0
          %184 = vsyncadd %s176, 0
          %s185 = sadd.s32 %s26, %s182
          %s186 = smul.addr %s185, 8
          %s187 = scalar_lea.hbm %s1, %s186
          %s189 = sshll.u32 %s187, 4
          %s190 = int_to_ptr.hbm [resolvable:$true] %s189
          %s191 = sshll.u32 %s179, 4
          %s192 = int_to_ptr.vmem [resolvable:$true] %s191
          %194 = dma.hbm_to_vmem [thread:$0]  %s190, 128, %s192, %s176
        $region24: #{tpu_custom_call.1} parent=15 // pred_fallthru
          _
      $region16: #{tpu_custom_call.1} parent=5 // pred_fallthru
        _
      %p195 = scmp.le.s32.totalorder 1, %s17
      %p196 = scmp.lt.s32.totalorder %s17, 3
      %p197 = pnand %p195, %p196
      %p198 = pneg %p197
      // Predicated region
      $region25: #{tpu_custom_call.1} parent=5 // pred_check
        _
      $region26: #{tpu_custom_call.1} parent=5 // pred_check_branch
        %200 = sbr.rel (%p197) target = $region28
      $region27: #{tpu_custom_call.1} parent=5 // pred_region
        %s201 = ssub.s32 %s17, 1
        %s202 = sand.u32 %s57, 1
        %s203 = scalar_lea.sflag [#allocation4], %s202
        %s204 = sand.u32 %s57, 1
        %s205 = smul.addr %s204, 8
        %s206 = scalar_lea.vmem [#allocation3], %s205
        // Predicated region
        $region29: #{tpu_custom_call.1} parent=27 // pred_check
          %p207 = pneg %p70
        $region30: #{tpu_custom_call.1} parent=27 // pred_check_branch
          %209 = sbr.rel (%p207) target = $region32
        $region31: #{tpu_custom_call.1} parent=27 // pred_region
          %211 = dma.done %s203, 128
        $region32: #{tpu_custom_call.1} parent=27 // pred_fallthru
          _
        %s212 = sand.u32 %s91, 1
        %s213 = scalar_lea.sflag [#allocation7], %s212
        %s214 = sand.u32 %s91, 1
        %s215 = smul.addr %s214, 8
        %s216 = scalar_lea.vmem [#allocation6], %s215
        // Predicated region
        $region33: #{tpu_custom_call.1} parent=27 // pred_check
          %p217 = pneg %p104
        $region34: #{tpu_custom_call.1} parent=27 // pred_check_branch
          %219 = sbr.rel (%p217) target = $region36
        $region35: #{tpu_custom_call.1} parent=27 // pred_region
          %221 = dma.done %s213, 128
        $region36: #{tpu_custom_call.1} parent=27 // pred_fallthru
          _
        %s222 = sand.u32 %s57, 1
        %s223 = scalar_lea.sflag [#allocation4], %s222
        %s224 = sand.u32 %s57, 1
        %s225 = smul.addr %s224, 8
        %s226 = scalar_lea.vmem [#allocation3], %s225
        %p227 = pneg %p70
        %p228 = pneg %p67
        %s229 = sand.u32 %s91, 1
        %s230 = scalar_lea.sflag [#allocation7], %s229
        %s231 = sand.u32 %s91, 1
        %s232 = smul.addr %s231, 8
        %s233 = scalar_lea.vmem [#allocation6], %s232
        %p234 = pneg %p104
        %p235 = pneg %p101
        %p236 = pneg %p130
        %p237 = pneg %p127
        %s238 = sand.u32 %s117, 1
        %s239 = scalar_lea.sflag [#allocation5], %s238
        %s240 = sand.u32 %s117, 1
        %s241 = smul.addr %s240, 8
        %s242 = scalar_lea.vmem [#allocation8], %s241
        %s243 = sadd.s32 %s27, %s28
        %p244 = scmp.lt.s32.totalorder %s243, 0
        %s245 = scalar_select %p244, %s243, 0
        %s246 = sadd.s32 %s27, %s28
        %p247 = scmp.lt.s32.totalorder %s246, 0
        %s248 = scalar_select %p247, %s246, 0
        %p249 = scmp.eq.s32.totalorder %s28, 0
        %p250 = scmp.eq.s32.totalorder %s29, 0
        %p251 = pnand %p249, %p250
        %p252 = pneg %p251
        // Predicated region
        $region37: #{tpu_custom_call.1} parent=27 // pred_check
          _
        $region38: #{tpu_custom_call.1} parent=27 // pred_check_branch
          %254 = sbr.rel (%p251) target = $region40
        $region39: #{tpu_custom_call.1} parent=27 // pred_region
          %255 = vst [vmem:[#allocation2] sm:$0xff] 0.0
        $region40: #{tpu_custom_call.1} parent=27 // pred_fallthru
          _
        %v256 = vld [vmem:[%s206] sm:$0xff]
        %v257 = vld [vmem:[%s216] sm:$0xff]
        %s258 = sadd.s32 %s27, %s28
        %s259 = smul.u32 %s258, 8
        %s260 = smul.u32 %s29, 128
        %v261 = vlaneseq
        %v262 = vshrl.u32 %v261, 7
        %v263 = vstv %s259
        %v264 = vadd.s32 %v263, %v262
        %v265 = vlaneseq
        %v266 = vand.u32 %v265, 127
        %v267 = vstv %s260
        %v268 = vadd.s32 %v267, %v266
        %vm269 = vcmp.lt.s32.totalorder %v264, 8
        %vm270 = vcmp.lt.s32.totalorder %v268, 128
        %vm271 = vmand %vm269, %vm270
        %v272 = vsub.f32 %v257, 1.0
        %v273 = vmul.f32 %v272, 1.442695
        %v274 = vpow.pop %v273
        %v275 = vsub.f32 %v274, %v256
        %v276 = vsel %vm271, %v275, 0.0
        %v277 = vld [vmem:[#allocation2] sm:$0xff]
        %v278 = vadd.f32 %v276, 0.0
        %v279 = vadd.f32 %v277, %v278
        %280 = vst [vmem:[#allocation2] sm:$0xff] %v279
        // Predicated region
        $region41: #{tpu_custom_call.1} parent=27 // pred_check
          _
        $region42: #{tpu_custom_call.1} parent=27 // pred_check_branch
          %282 = sbr.rel (%p251) target = $region44
        $region43: #{tpu_custom_call.1} parent=27 // pred_region
          %v283 = vld [vmem:[#allocation2] sm:$0xff]
          %v284 = vadd.f32 %v283, 0.0
          %285 = vst [vmem:[%s242] sm:$0xff] %v284
        $region44: #{tpu_custom_call.1} parent=27 // pred_fallthru
          _
        %s286 = sand.u32 %s117, 1
        %s287 = scalar_lea.sflag [#allocation5], %s286
        %s288 = sand.u32 %s117, 1
        %s289 = smul.addr %s288, 8
        %s290 = scalar_lea.vmem [#allocation8], %s289
        // Predicated region
        $region45: #{tpu_custom_call.1} parent=27 // pred_check
          %p291 = pneg %p127
        $region46: #{tpu_custom_call.1} parent=27 // pred_check_branch
          %293 = sbr.rel (%p291) target = $region48
        $region47: #{tpu_custom_call.1} parent=27 // pred_region
          %295 = vsyncadd %s287, 0
          %s296 = smul.addr %s27, 8
          %s297 = scalar_lea.hbm %s2, %s296
          %s299 = sshll.u32 %s290, 4
          %s300 = int_to_ptr.vmem [resolvable:$true] %s299
          %s301 = sshll.u32 %s297, 4
          %s302 = int_to_ptr.hbm [resolvable:$true] %s301
          %304 = dma.vmem_to_hbm [thread:$0]  %s300, 128, %s302, %s287
        $region48: #{tpu_custom_call.1} parent=27 // pred_fallthru
          _
      $region28: #{tpu_custom_call.1} parent=5 // pred_fallthru
        _
      %p305 = scmp.le.s32.totalorder 2, %s17
      // Predicated region
      $region49: #{tpu_custom_call.1} parent=5 // pred_check
        %p306 = pneg %p305
      $region50: #{tpu_custom_call.1} parent=5 // pred_check_branch
        %308 = sbr.rel (%p306) target = $region52
      $region51: #{tpu_custom_call.1} parent=5 // pred_region
        %s309 = ssub.s32 %s17, 2
        // Predicated region
        $region53: #{tpu_custom_call.1} parent=51 // pred_check
          %p310 = pneg %p133
        $region54: #{tpu_custom_call.1} parent=51 // pred_check_branch
          %312 = sbr.rel (%p310) target = $region56
        $region55: #{tpu_custom_call.1} parent=51 // pred_region
          %s313 = sand.u32 %s118, 1
          %s314 = scalar_lea.sflag [#allocation5], %s313
          %s315 = sand.u32 %s118, 1
          %s316 = smul.addr %s315, 8
          %s317 = scalar_lea.vmem [#allocation8], %s316
          %319 = dma.done %s314, 128
        $region56: #{tpu_custom_call.1} parent=51 // pred_fallthru
          _
      $region52: #{tpu_custom_call.1} parent=5 // pred_fallthru
        _
    $region6: #{tpu_custom_call.1} parent=1 // loop_footer
      %s21 = sadd.s32 1, %s17
    $region7: #{tpu_custom_call.1} parent=1 // loop_footer_branch
      %16 = sbr.rel target = $region3
    $region8: #{tpu_custom_call.1} parent=1 // loop_exit
      _
    %320 = vsyncpa [#allocation4], 1
    %s321 = scalar_lea.sflag [#allocation4], 1
    %322 = vsyncpa %s321, 1
    %323 = vsyncpa [#allocation7], 1
    %s324 = scalar_lea.sflag [#allocation7], 1
    %325 = vsyncpa %s324, 1
    %326 = vsyncpa [#allocation5], 1
    %s327 = scalar_lea.sflag [#allocation5], 1
    %328 = vsyncpa %s327, 1

</llo_original>
